<compile_context>
chip_gen: v7x
topology: tpu7x:2x2x1
jax: 0.10.0
libtpu: 0.0.40
codegen_flags: <defaults>
</compile_context>

<pallas_src>
import jax
import jax.numpy as jnp
from jax.experimental import pallas as pl
from jax.experimental.pallas import tpu as pltpu


def _cdiv(a, b):
    return (a + b - 1) // b


def _round_up(x, m):
    return ((x + m - 1) // m) * m


# ---------------------------------------------------------------------------
# Kernels
# ---------------------------------------------------------------------------

def _ffn_resident_kernel(x_ref, wi_ref, wo_ref, o_ref):
    # x_ref:  (tm, d_model)      bf16  token tile
    # wi_ref: (d_model, d_ff_p)  bf16  full Wi^T        (constant block -> fetched once)
    # wo_ref: (d_ff_p, d_model)  bf16  full (Wo*mask)^T (constant block -> fetched once)
    # o_ref:  (tm, d_model)
    h = jnp.dot(x_ref[...], wi_ref[...], preferred_element_type=jnp.float32)
    h = jnp.maximum(h, 0.0)                       # ReLU in f32 on the VPU
    # TODO(synk): dropout is identity (eval mode); training-mode dropout would
    # use pltpu.prng_seed / pltpu.prng_random_bits here.
    o_ref[...] = jnp.dot(h.astype(wo_ref.dtype), wo_ref[...],
                         preferred_element_type=jnp.float32).astype(o_ref.dtype)


def _ffn_tiled_kernel(x_ref, wi_ref, wo_ref, o_ref, acc_ref):
    # d_ff-tiled fallback.  Grid = (token_tiles, d_ff_tiles); d_ff is the
    # innermost ("arbitrary") reduction axis, accumulated in an f32 VMEM scratch.
    # x_ref: (tm, d_model) bf16; wi_ref: (d_model, tf) bf16; wo_ref: (tf, d_model) bf16
    k = pl.program_id(1)

    @pl.when(k == 0)
    def _():
        acc_ref[...] = jnp.zeros_like(acc_ref)

    h = jnp.dot(x_ref[...], wi_ref[...], preferred_element_type=jnp.float32)
    h = jnp.maximum(h, 0.0)
    acc_ref[...] += jnp.dot(h.astype(wo_ref.dtype), wo_ref[...],
                            preferred_element_type=jnp.float32)

    @pl.when(k == pl.num_programs(1) - 1)
    def _():
        o_ref[...] = acc_ref[...].astype(o_ref.dtype)


# ---------------------------------------------------------------------------
# Sizing helpers
# ---------------------------------------------------------------------------

def _device_kind():
    try:
        return jax.devices()[0].device_kind.lower()
    except Exception:
        return ""


def _vmem_capacity_bytes():
    # v7x has 64 MiB VMEM per TensorCore; v5e/v6e have 128 MiB.
    return (64 << 20) if "v7" in _device_kind() else (128 << 20)


def _default_tm():
    # Tiled-path roofline crossover (tm FLOPs per streamed weight byte):
    # ~240 on v5e, ~620-680 on v6e/v7x.
    return 512 if "v5" in _device_kind() else 1024


def _choose_tm(n, tm_max):
    """Token tile: multiple of 16 (bf16 packs 2 rows/sublane), never > n."""
    tm_max = max(16, _round_up(tm_max, 16))
    tm_e = n if n <= tm_max else tm_max
    # v7x megacore: give the "parallel" token axis >= 2 tiles so both
    # TensorCores get work (one ~0.35us extra grid step on single-TC chips).
    if _cdiv(n, tm_e) < 2 and n >= 32:
        tm_e = _round_up(_cdiv(n, 2), 16)
    return tm_e


def _resident_footprint(tm, d_model, d_ff_p, out_itemsize):
    # Constant-index weight blocks are only DMA'd once but the pipeline still
    # allocates double buffers for them.
    # TODO(synk): pipeline_mode=pl.Buffered(1) on the weight BlockSpecs would
    # reclaim half of the resident-weight VMEM on v7x.
    w = 2 * (d_model * d_ff_p * 2) * 2            # Wi^T + Wo^T, bf16, 2 buffers
    act = 2 * tm * d_model * 2 + 2 * tm * d_model * out_itemsize
    inter = tm * d_ff_p * (4 + 2)                 # f32 h + bf16 copy for 2nd matmul
    return w + act + inter + (2 << 20)


def _tiled_footprint(tm, tf, d_model, out_itemsize):
    w = 2 * (d_model * tf * 2) * 2                # Wi^T + Wo^T tiles, bf16, 2 buffers
    act = 2 * tm * d_model * 2 + 2 * tm * d_model * out_itemsize
    acc = tm * d_model * 4
    inter = tm * tf * (4 + 2)
    return w + act + acc + inter + (2 << 20)


# ---------------------------------------------------------------------------
# Wrapper
# ---------------------------------------------------------------------------

def sparse_t5_dense_relu_dense(hidden_states, wi_weight, wo_weight,
                               layer_neuron_mask=None, *,
                               in_features_sparsified_wo=None,
                               tm=None, tf=None,
                               weights_resident=None,
                               vmem_budget_bytes=None):
    """Pallas implementation of SparseT5DenseReluDense.forward (eval mode).

    hidden_states: (batch, seq, d_model)
    wi_weight:     (d_ff, d_model)   -- PyTorch nn.Linear weight layout
    wo_weight:     (d_model, d_ff)   -- PyTorch nn.Linear weight layout
    layer_neuron_mask: optional (d_ff,)-broadcastable mask on the intermediate.
    in_features_sparsified_wo: effective d_ff (== wi.out_features_sparsified);
        < 8 returns zeros, otherwise Wi/Wo/mask are sliced to [:k] exactly like
        SparseLinear.forward.
    weights_resident: None = auto (VMEM budget), True/False forces the path.
    """
    b, s, d_model = hidden_states.shape
    d_ff_full = wi_weight.shape[0]
    assert wo_weight.shape == (d_model, d_ff_full)

    d_ff_eff = d_ff_full if in_features_sparsified_wo is None else int(in_features_sparsified_wo)
    d_ff_eff = min(d_ff_eff, d_ff_full)
    if d_ff_eff < 8:
        # torch.zeros_like(hidden_states) branch.
        return jnp.zeros_like(hidden_states)

    n = b * s
    out_dtype = hidden_states.dtype
    out_itemsize = jnp.dtype(out_dtype).itemsize

    # --- weight prep (one-time per call; in a real model do this at load) ----
    # Slice the sparsified d_ff, fold the neuron mask into Wo
    # (relu(h)*mask @ Wo^T == relu(h) @ (Wo*mask)^T, mask is a d_ff diagonal),
    # transpose once to canonical (M,K)x(K,N) MXU layouts, cast to bf16 and
    # zero-pad d_ff to a multiple of 128 (zero rows/cols contribute exactly 0).
    wi = wi_weight[:d_ff_eff, :]                        # (d_ff_eff, d_model)
    wo = wo_weight[:, :d_ff_eff]                        # (d_model, d_ff_eff)
    if layer_neuron_mask is not None:
        mask = layer_neuron_mask.reshape(-1)[:d_ff_eff].astype(jnp.float32)
        wo = wo.astype(jnp.float32) * mask[None, :]
    wi_t = jnp.transpose(wi).astype(jnp.bfloat16)       # (d_model, d_ff_eff)
    wo_t = jnp.transpose(wo).astype(jnp.bfloat16)       # (d_ff_eff, d_model)

    d_ff_p = _round_up(d_ff_eff, 128)
    if d_ff_p != d_ff_eff:
        wi_t = jnp.pad(wi_t, ((0, 0), (0, d_ff_p - d_ff_eff)))
        wo_t = jnp.pad(wo_t, ((0, d_ff_p - d_ff_eff), (0, 0)))

    # --- activations ----------------------------------------------------------
    # No explicit token padding: grid uses cdiv; the computation is
    # ROW-INDEPENDENT, so garbage in a partial final x block only produces
    # garbage in output rows that Pallas masks out on writeback.
    x = hidden_states.reshape(n, d_model)
    if x.dtype != jnp.bfloat16:
        # TODO(synk): CompilerParams(allow_input_fusion=...) could fold this
        # cast into the pallas_call operand and save one HBM pass over x.
        x = x.astype(jnp.bfloat16)

    # --- tile / path selection -------------------------------------------------
    capacity = _vmem_capacity_bytes()
    budget = vmem_budget_bytes if vmem_budget_bytes is not None else (capacity * 3) // 4
    tm_req = _default_tm() if tm is None else int(tm)

    resident_tm = None
    for tm_try in (min(tm_req, 512), 256, 128):
        tm_e = _choose_tm(n, tm_try)
        if _resident_footprint(tm_e, d_model, d_ff_p, out_itemsize) <= budget:
            resident_tm = tm_e
            break
    if weights_resident is None:
        use_resident = resident_tm is not None
    else:
        use_resident = bool(weights_resident)
        if use_resident and resident_tm is None:
            resident_tm = _choose_tm(n, min(tm_req, 512))

    flops = int(4 * n * d_model * d_ff_p)                 # 2 matmuls, 2 flops/MAC
    x_bytes = int(x.size) * 2
    out_total_bytes = n * d_model * out_itemsize
    w_bytes = (int(wi_t.size) + int(wo_t.size)) * 2

    if use_resident:
        # -------- weight-resident single-pass path --------
        tm_e = resident_tm
        grid = (_cdiv(n, tm_e),)
        needed = _resident_footprint(tm_e, d_model, d_ff_p, out_itemsize)
        vmem_limit = int(min(max(needed + (8 << 20), 32 << 20), capacity - (2 << 20)))
        cost = pl.CostEstimate(
            flops=flops, transcendentals=0,
            bytes_accessed=int(x_bytes + out_total_bytes + w_bytes))   # weights once
        out = pl.pallas_call(
            _ffn_resident_kernel,
            out_shape=jax.ShapeDtypeStruct((n, d_model), out_dtype),
            grid_spec=pltpu.PrefetchScalarGridSpec(
                num_scalar_prefetch=0,
                grid=grid,
                in_specs=[
                    pl.BlockSpec((tm_e, d_model), lambda i: (i, 0)),      # x tile
                    # Constant block index => Wi^T / (Wo*mask)^T are DMA'd once
                    # and stay resident in VMEM across all token tiles.
                    pl.BlockSpec((d_model, d_ff_p), lambda i: (0, 0)),
                    pl.BlockSpec((d_ff_p, d_model), lambda i: (0, 0)),
                ],
                out_specs=pl.BlockSpec((tm_e, d_model), lambda i: (i, 0)),
            ),
            compiler_params=pltpu.CompilerParams(
                dimension_semantics=("parallel",),
                vmem_limit_bytes=vmem_limit),
            cost_estimate=cost,
        )(x, wi_t, wo_t)
    else:
        # -------- d_ff-tiled fallback (weights too large for VMEM residency) --------
        tm_e = _choose_tm(n, tm_req)
        cands = [c for c in (2048, 1024, 512, 256, 128)
                 if c <= d_ff_p and d_ff_p % c == 0]
        if tf is not None and tf <= d_ff_p and d_ff_p % tf == 0 and tf % 128 == 0:
            cands = [int(tf)] + cands
        if not cands:
            cands = [d_ff_p]
        tf_e = None
        while True:
            for c in cands:
                if _tiled_footprint(tm_e, c, d_model, out_itemsize) <= budget:
                    tf_e = c
                    break
            if tf_e is not None or tm_e <= 64:
                break
            tm_e = max(64, _round_up(tm_e // 2, 16))
        if tf_e is None:
            tf_e = cands[-1]

        grid = (_cdiv(n, tm_e), d_ff_p // tf_e)
        needed = _tiled_footprint(tm_e, tf_e, d_model, out_itemsize)
        vmem_limit = int(min(max(needed + (8 << 20), 32 << 20), capacity - (2 << 20)))
        cost = pl.CostEstimate(
            flops=flops, transcendentals=0,
            # Weights are re-streamed once per token tile in this path.
            bytes_accessed=int(x_bytes + out_total_bytes + w_bytes * grid[0]))
        out = pl.pallas_call(
            _ffn_tiled_kernel,
            out_shape=jax.ShapeDtypeStruct((n, d_model), out_dtype),
            grid_spec=pltpu.PrefetchScalarGridSpec(
                num_scalar_prefetch=0,
                grid=grid,
                in_specs=[
                    pl.BlockSpec((tm_e, d_model), lambda i, k: (i, 0)),   # x tile
                    pl.BlockSpec((d_model, tf_e), lambda i, k: (0, k)),   # Wi^T cols
                    pl.BlockSpec((tf_e, d_model), lambda i, k: (k, 0)),   # Wo^T rows
                ],
                out_specs=pl.BlockSpec((tm_e, d_model), lambda i, k: (i, 0)),
                scratch_shapes=[pltpu.VMEM((tm_e, d_model), jnp.float32)],
            ),
            compiler_params=pltpu.CompilerParams(
                dimension_semantics=("parallel", "arbitrary"),
                vmem_limit_bytes=vmem_limit),
            cost_estimate=cost,
        )(x, wi_t, wo_t)

    return out.reshape(b, s, d_model)


# ---------------------------------------------------------------------------
# Precision-matched reference + self-test
# ---------------------------------------------------------------------------

def _reference(hidden_states, wi_weight, wo_weight, layer_neuron_mask=None,
               in_features_sparsified_wo=None):
    b, s, d_model = hidden_states.shape
    d_ff = wi_weight.shape[0]
    k = d_ff if in_features_sparsified_wo is None else min(int(in_features_sparsified_wo), d_ff)
    if k < 8:
        return jnp.zeros_like(hidden_states)
    x = hidden_states.astype(jnp.bfloat16).astype(jnp.float32).reshape(-1, d_model)
    wi = wi_weight[:k, :].astype(jnp.bfloat16).astype(jnp.float32)
    wo = wo_weight[:, :k].astype(jnp.float32)
    if layer_neuron_mask is not None:
        wo = wo * layer_neuron_mask.reshape(-1)[:k].astype(jnp.float32)[None, :]
    wo = wo.astype(jnp.bfloat16).astype(jnp.float32)
    h = jnp.maximum(x @ wi.T, 0.0)
    h = h.astype(jnp.bfloat16).astype(jnp.float32)
    out = h @ wo.T
    return out.reshape(b, s, d_model).astype(hidden_states.dtype)


if __name__ == "__main__":
    key = jax.random.PRNGKey(0)

    def make(batch, seq, d_model, d_ff, k):
        k_x, k_wi, k_wo, k_m = jax.random.split(k, 4)
        x = jax.random.normal(k_x, (batch, seq, d_model), jnp.float32)
        wi = jax.random.normal(k_wi, (d_ff, d_model), jnp.float32) * (d_model ** -0.5)
        wo = jax.random.normal(k_wo, (d_model, d_ff), jnp.float32) * (d_ff ** -0.5)
        mask = (jax.random.uniform(k_m, (d_ff,)) > 0.3).astype(jnp.float32)
        return x, wi, wo, mask

    def check(out, ref, name):
        assert out.shape == ref.shape, name
        err = float(jnp.max(jnp.abs(out - ref)))
        assert jnp.allclose(out, ref, atol=2e-2, rtol=2e-2), f"{name}: max err {err}"

    ks = jax.random.split(key, 3)

    # Case 1: weight-resident path, neuron mask folded into Wo.
    x, wi, wo, mask = make(2, 8, 128, 256, ks[0])
    out = jax.block_until_ready(sparse_t5_dense_relu_dense(x, wi, wo, mask))
    check(out, _reference(x, wi, wo, mask), "resident+mask")

    # Case 2: forced d_ff-tiled fallback (2-step reduction, tf=128) + mask.
    out = jax.block_until_ready(
        sparse_t5_dense_relu_dense(x, wi, wo, mask, weights_resident=False, tf=128))
    check(out, _reference(x, wi, wo, mask), "tiled+mask")

    # Case 3: ragged token count (3*5=15 -> partial block) and d_ff=200
    # (not a multiple of 128 -> zero-padded to 256), no mask.
    x3, wi3, wo3, _ = make(3, 5, 128, 200, ks[1])
    out = jax.block_until_ready(sparse_t5_dense_relu_dense(x3, wi3, wo3, None))
    check(out, _reference(x3, wi3, wo3, None), "ragged+dffpad")

    # Case 4: sparsified d_ff (8 <= k < d_ff): Wi/Wo/mask sliced to [:128].
    out = jax.block_until_ready(
        sparse_t5_dense_relu_dense(x, wi, wo, mask, in_features_sparsified_wo=128))
    check(out, _reference(x, wi, wo, mask, in_features_sparsified_wo=128), "sparsified")

    # Case 5: sparsified below 8 -> zeros_like(hidden_states).
    z = jax.block_until_ready(
        sparse_t5_dense_relu_dense(x, wi, wo, None, in_features_sparsified_wo=4))
    assert z.shape == x.shape and bool(jnp.all(z == 0))

    print("KERNEL_OK")
</pallas_src>

<mosaic_0001>
module attributes {stable_mosaic.version = 11 : i64} {
  func.func @_ffn_resident_kernel(%arg0: i32, %arg1: memref<16x128xbf16, #tpu.memory_space<vmem>>, %arg2: memref<128x256xbf16, #tpu.memory_space<vmem>>, %arg3: memref<256x128xbf16, #tpu.memory_space<vmem>>, %arg4: memref<16x128xf32, #tpu.memory_space<vmem>>) attributes {dimension_semantics = [#tpu.dimension_semantics<parallel>], iteration_bounds = array<i64: 1>, scalar_prefetch = 0 : i64, scratch_operands = 0 : i64, tpu.core_type = #tpu.core_type<tc>, window_params = [{transform_indices = @transform_0, window_bounds = array<i64: 16, 128>}, {pipeline_mode = #tpu.pipeline_mode<synchronous>, transform_indices = @transform_1, window_bounds = array<i64: 128, 256>}, {pipeline_mode = #tpu.pipeline_mode<synchronous>, transform_indices = @transform_2, window_bounds = array<i64: 256, 128>}, {transform_indices = @transform_3, window_bounds = array<i64: 16, 128>}]} {
    %c0 = arith.constant 0 : index
    %c0_0 = arith.constant 0 : index
    %0 = vector.load %arg1[%c0, %c0_0] : memref<16x128xbf16, #tpu.memory_space<vmem>>, vector<16x128xbf16>
    %c0_1 = arith.constant 0 : index
    %c0_2 = arith.constant 0 : index
    %1 = vector.load %arg2[%c0_1, %c0_2] : memref<128x256xbf16, #tpu.memory_space<vmem>>, vector<128x256xbf16>
    %cst = arith.constant dense<0.000000e+00> : vector<16x256xf32>
    %2 = tpu.matmul %0, %1, %cst {dimension_numbers = #tpu.dot_dimension_numbers<[1], [0], [0], [1], [0, 0, 1, 1], [], []>} : vector<16x128xbf16>, vector<128x256xbf16>, vector<16x256xf32> -> vector<16x256xf32>
    %cst_3 = arith.constant 0.000000e+00 : f32
    %3 = vector.broadcast %cst_3 : f32 to vector<16x256xf32>
    %4 = arith.maximumf %2, %3 : vector<16x256xf32>
    %5 = arith.truncf %4 : vector<16x256xf32> to vector<16x256xbf16>
    %c0_4 = arith.constant 0 : index
    %c0_5 = arith.constant 0 : index
    %6 = vector.load %arg3[%c0_4, %c0_5] : memref<256x128xbf16, #tpu.memory_space<vmem>>, vector<256x128xbf16>
    %cst_6 = arith.constant dense<0.000000e+00> : vector<16x128xf32>
    %7 = tpu.matmul %5, %6, %cst_6 {dimension_numbers = #tpu.dot_dimension_numbers<[1], [0], [0], [1], [0, 0, 1, 1], [], []>} : vector<16x256xbf16>, vector<256x128xbf16>, vector<16x128xf32> -> vector<16x128xf32>
    %c0_7 = arith.constant 0 : index
    %c0_8 = arith.constant 0 : index
    %8 = vector.load %arg4[%c0_7, %c0_8] : memref<16x128xf32, #tpu.memory_space<vmem>>, vector<16x128xf32>
    tpu.vector_store %arg4[%c0_7, %c0_8], %7 {strides = array<i32>} : memref<16x128xf32, #tpu.memory_space<vmem>>, vector<16x128xf32>,
    return
  }
  func.func @transform_0(%arg0: i32) -> (i32, i32) {
    %c0_i32 = arith.constant 0 : i32
    %c0_i32_0 = arith.constant 0 : i32
    return %arg0, %c0_i32 : i32, i32
  }
  func.func @transform_1(%arg0: i32) -> (i32, i32) {
    %c0_i32 = arith.constant 0 : i32
    %c0_i32_0 = arith.constant 0 : i32
    %c0_i32_1 = arith.constant 0 : i32
    return %c0_i32, %c0_i32_0 : i32, i32
  }
  func.func @transform_2(%arg0: i32) -> (i32, i32) {
    %c0_i32 = arith.constant 0 : i32
    %c0_i32_0 = arith.constant 0 : i32
    %c0_i32_1 = arith.constant 0 : i32
    return %c0_i32, %c0_i32_0 : i32, i32
  }
  func.func @transform_3(%arg0: i32) -> (i32, i32) {
    %c0_i32 = arith.constant 0 : i32
    %c0_i32_0 = arith.constant 0 : i32
    return %arg0, %c0_i32 : i32, i32
  }
}

</mosaic_0001>

<llo_original>
// kernel: tpu_custom_call.1
$region0: #{tpu_custom_call.1}
  #allocation0 [shape = 'u32[]', space=smem, size = 0x4, offset = 0x4, fixed_abs, tag = 'smem constant byte address 0x4 - core index']
  #allocation1 [shape = 'u32[144,128]{1,0:T(1,128)}', space=vmem, size = 0x12000, scoped, tag = 'internal scratch']
  %s0 = inlined_call_operand.hbm [shape: bf16[16,128], index: 0, kind: input, shape index: {}]
  %s1 = inlined_call_operand.hbm [shape: bf16[128,256], index: 1, kind: input, shape index: {}]
  %s2 = inlined_call_operand.hbm [shape: bf16[256,128], index: 2, kind: input, shape index: {}]
  %s3 = inlined_call_operand.hbm [shape: f32[16,128], index: 3, kind: output, shape index: {}]
  %s4 = sld [smem:[#allocation0]]
  $region34: #{tpu_custom_call.1} parent=0
    _
  %s6 = ssub.s32 1, %s4
  %s7 = scalar_select 0, %s6, %s4
  $region1: #{tpu_custom_call.1} parent=0
    #allocation2 [shape = 'u8[4096]{0}', space=vmem, size = 0x1000, scoped, tag = 'input window, operand 0, single buffered']
    #allocation3 [shape = 's32[1]{0}', space=sflag, size = 0x4, scoped, tag = 'scoped memory for tpu_custom_call.1']
    #allocation4 [shape = 's32[1]{0}', space=sflag, size = 0x4, scoped, tag = 'scoped memory for tpu_custom_call.1']
    #allocation5 [shape = 'u8[65536]{0}', space=vmem, size = 0x10000, scoped, tag = 'input window, operand 1, single buffered']
    #allocation6 [shape = 's32[1]{0}', space=sflag, size = 0x4, scoped, tag = 'scoped memory for tpu_custom_call.1']
    #allocation7 [shape = 'u8[65536]{0}', space=vmem, size = 0x10000, scoped, tag = 'input window, operand 2, single buffered']
    #allocation8 [shape = 'u8[8192]{0}', space=vmem, size = 0x2000, scoped, tag = 'output window, operand 0, single buffered']
    %8 = vsyncpa [#allocation3], 0
    %9 = vsyncpa [#allocation6], 0
    %10 = vsyncpa [#allocation4], 0
    // Predicated region
    $region2: #{tpu_custom_call.1} parent=1 // pred_check
      _
    $region3: #{tpu_custom_call.1} parent=1 // pred_check_branch
      %12 = sbr.rel (0) target = $region5
    $region4: #{tpu_custom_call.1} parent=1 // pred_region
      %s14 = ssub.s32 128, 128
      %15 = vsyncadd [#allocation3], %s14
      %s16 = sshll.u32 [#allocation2], 4
      %s17 = int_to_ptr.vmem [resolvable:$true] %s16
      %22 = dma.hbm_to_vmem [thread:$0]  %s0, 128, %s17, [#allocation3], 64, 64, 4
    $region5: #{tpu_custom_call.1} parent=1 // pred_fallthru
      _
    // Predicated region
    $region6: #{tpu_custom_call.1} parent=1 // pred_check
      _
    $region7: #{tpu_custom_call.1} parent=1 // pred_check_branch
      %24 = sbr.rel (0) target = $region9
    $region8: #{tpu_custom_call.1} parent=1 // pred_region
      %s26 = ssub.s32 2048, 2048
      %27 = vsyncadd [#allocation6], %s26
      %s28 = sshll.u32 [#allocation5], 4
      %s29 = int_to_ptr.vmem [resolvable:$true] %s28
      %34 = dma.hbm_to_vmem [thread:$0]  %s1, 2048, %s29, [#allocation6], 128, 128, 8
    $region9: #{tpu_custom_call.1} parent=1 // pred_fallthru
      _
    // Predicated region
    $region10: #{tpu_custom_call.1} parent=1 // pred_check
      _
    $region11: #{tpu_custom_call.1} parent=1 // pred_check_branch
      %36 = sbr.rel (0) target = $region13
    $region12: #{tpu_custom_call.1} parent=1 // pred_region
      %s38 = ssub.s32 2048, 2048
      %39 = vsyncadd [#allocation6], %s38
      %s40 = sshll.u32 [#allocation7], 4
      %s41 = int_to_ptr.vmem [resolvable:$true] %s40
      %46 = dma.hbm_to_vmem [thread:$0]  %s2, 2048, %s41, [#allocation6], 64, 64, 4
    $region13: #{tpu_custom_call.1} parent=1 // pred_fallthru
      _
    // Predicated region
    $region14: #{tpu_custom_call.1} parent=1 // pred_check
      _
    $region15: #{tpu_custom_call.1} parent=1 // pred_check_branch
      %48 = sbr.rel (0) target = $region17
    $region16: #{tpu_custom_call.1} parent=1 // pred_region
      %49 = dma.done [#allocation3], 128
    $region17: #{tpu_custom_call.1} parent=1 // pred_fallthru
      _
    // Predicated region
    $region18: #{tpu_custom_call.1} parent=1 // pred_check
      _
    $region19: #{tpu_custom_call.1} parent=1 // pred_check_branch
      %51 = sbr.rel (0) target = $region21
    $region20: #{tpu_custom_call.1} parent=1 // pred_region
      %52 = dma.done [#allocation6], 2048
    $region21: #{tpu_custom_call.1} parent=1 // pred_fallthru
      _
    // Predicated region
    $region22: #{tpu_custom_call.1} parent=1 // pred_check
      _
    $region23: #{tpu_custom_call.1} parent=1 // pred_check_branch
      %54 = sbr.rel (0) target = $region25
    $region24: #{tpu_custom_call.1} parent=1 // pred_region
      %55 = dma.done [#allocation6], 2048
    $region25: #{tpu_custom_call.1} parent=1 // pred_fallthru
      _
    %v57 = vld [vmem:[#allocation2] sm:$0xf]
    %v58 = vld [vmem:[#allocation2 + $0x4] sm:$0xf]
    %v59 = vld [vmem:[#allocation5] sm:$0xff]
    %v60 = vld [vmem:[#allocation5 + $0x8] sm:$0xff]
    %v61 = vld [vmem:[#allocation5 + $0x10] sm:$0xff]
    %v62 = vld [vmem:[#allocation5 + $0x18] sm:$0xff]
    %v63 = vld [vmem:[#allocation5 + $0x20] sm:$0xff]
    %v64 = vld [vmem:[#allocation5 + $0x28] sm:$0xff]
    %v65 = vld [vmem:[#allocation5 + $0x30] sm:$0xff]
    %v66 = vld [vmem:[#allocation5 + $0x38] sm:$0xff]
    %v67 = vld [vmem:[#allocation5 + $0x40] sm:$0xff]
    %v68 = vld [vmem:[#allocation5 + $0x48] sm:$0xff]
    %v69 = vld [vmem:[#allocation5 + $0x50] sm:$0xff]
    %v70 = vld [vmem:[#allocation5 + $0x58] sm:$0xff]
    %v71 = vld [vmem:[#allocation5 + $0x60] sm:$0xff]
    %v72 = vld [vmem:[#allocation5 + $0x68] sm:$0xff]
    %v73 = vld [vmem:[#allocation5 + $0x70] sm:$0xff]
    %v74 = vld [vmem:[#allocation5 + $0x78] sm:$0xff]
    %v77 = vunpack.c.l.b16 %v57
    %v78 = vunpack.c.l.b16 %v58
    %v79 = vpack.c.b16 %v78, %v77
    %v97 = vunpack.c.l.b16 %v59
    %v98 = vunpack.c.h.b16 %v59
    %v99 = vunpack.c.l.b16 %v60
    %v100 = vunpack.c.h.b16 %v60
    %v101 = vunpack.c.l.b16 %v61
    %v102 = vunpack.c.h.b16 %v61
    %v103 = vunpack.c.l.b16 %v62
    %v104 = vunpack.c.h.b16 %v62
    %v105 = vunpack.c.l.b16 %v63
    %v106 = vunpack.c.h.b16 %v63
    %v107 = vunpack.c.l.b16 %v64
    %v108 = vunpack.c.h.b16 %v64
    %v109 = vunpack.c.l.b16 %v65
    %v110 = vunpack.c.h.b16 %v65
    %v111 = vunpack.c.l.b16 %v66
    %v112 = vunpack.c.h.b16 %v66
    %v113 = vunpack.c.l.b16 %v67
    %v114 = vunpack.c.h.b16 %v67
    %v115 = vunpack.c.l.b16 %v68
    %v116 = vunpack.c.h.b16 %v68
    %v117 = vunpack.c.l.b16 %v69
    %v118 = vunpack.c.h.b16 %v69
    %v119 = vunpack.c.l.b16 %v70
    %v120 = vunpack.c.h.b16 %v70
    %v121 = vunpack.c.l.b16 %v71
    %v122 = vunpack.c.h.b16 %v71
    %v123 = vunpack.c.l.b16 %v72
    %v124 = vunpack.c.h.b16 %v72
    %v125 = vunpack.c.l.b16 %v73
    %v126 = vunpack.c.h.b16 %v73
    %v127 = vunpack.c.l.b16 %v74
    %v128 = vunpack.c.h.b16 %v74
    %v129 = vpack.c.b16 %v99, %v97
    %v130 = vpack.c.b16 %v100, %v98
    %v131 = vpack.c.b16 %v103, %v101
    %v132 = vpack.c.b16 %v104, %v102
    %v133 = vpack.c.b16 %v107, %v105
    %v134 = vpack.c.b16 %v108, %v106
    %v135 = vpack.c.b16 %v111, %v109
    %v136 = vpack.c.b16 %v112, %v110
    %v137 = vpack.c.b16 %v115, %v113
    %v138 = vpack.c.b16 %v116, %v114
    %v139 = vpack.c.b16 %v119, %v117
    %v140 = vpack.c.b16 %v120, %v118
    %v141 = vpack.c.b16 %v123, %v121
    %v142 = vpack.c.b16 %v124, %v122
    %v143 = vpack.c.b16 %v127, %v125
    %v144 = vpack.c.b16 %v128, %v126
    %161 = vmatprep.subr.bf16.mxu0 %v130
    %162 = vmatpush1.bf16.msra.mxu0 %v129
    %163 = vmatprep.subr.bf16.mxu0 %v132
    %164 = vmatpush1.bf16.msra.mxu0 %v131
    %165 = vmatprep.subr.bf16.mxu0 %v134
    %166 = vmatpush1.bf16.msra.mxu0 %v133
    %167 = vmatprep.subr.bf16.mxu0 %v136
    %168 = vmatpush1.bf16.msra.mxu0 %v135
    %169 = vmatprep.subr.bf16.mxu0 %v138
    %170 = vmatpush1.bf16.msra.mxu0 %v137
    %171 = vmatprep.subr.bf16.mxu0 %v140
    %172 = vmatpush1.bf16.msra.mxu0 %v139
    %173 = vmatprep.subr.bf16.mxu0 %v142
    %174 = vmatpush1.bf16.msra.mxu0 %v141
    %175 = vmatprep.subr.bf16.mxu0 %v144
    %176 = vmatpush1.bf16.msra.mxu0 %v143
    %177 = vmatprep.subr.bf16.mxu0 0
    %178 = vmatpush1.bf16.msra.mxu0 0
    %179 = vmatprep.subr.bf16.mxu0 0
    %180 = vmatpush1.bf16.msra.mxu0 0
    %181 = vmatprep.subr.bf16.mxu0 0
    %182 = vmatpush1.bf16.msra.mxu0 0
    %183 = vmatprep.subr.bf16.mxu0 0
    %184 = vmatpush1.bf16.msra.mxu0 0
    %185 = vmatprep.subr.bf16.mxu0 0
    %186 = vmatpush1.bf16.msra.mxu0 0
    %187 = vmatprep.subr.bf16.mxu0 0
    %188 = vmatpush1.bf16.msra.mxu0 0
    %189 = vmatprep.subr.bf16.mxu0 0
    %190 = vmatpush1.bf16.msra.mxu0 0
    %191 = vmatprep.subr.bf16.mxu0 0
    %192 = vmatpush1.bf16.msra.mxu0 0
    %193 = vmatprep.mubr.bf16.mxu0 0
    %194 = vmatmul.mubr.bf16.gmra.mrb[0].mxu0 %v79
    %v195 = vpop.f32.mrb[0].mxu0
    %v196 = vadd.f32 0.0, %v195
    %v197 = vpop.f32.mrb[0].mxu0
    %v198 = vadd.f32 0.0, %v197
    %v199 = vpop.f32.mrb[0].mxu0
    %v200 = vadd.f32 0.0, %v199
    %v201 = vpop.f32.mrb[0].mxu0
    %v202 = vadd.f32 0.0, %v201
    %203 = vdwg.mxu0
    %v204 = vmax.f32 %v196, 0.0
    %v205 = vmax.f32 %v198, 0.0
    %v206 = vmax.f32 %v200, 0.0
    %v207 = vmax.f32 %v202, 0.0
    %v208 = vpack.c.bf16 %v206, %v204
    %v209 = vpack.c.bf16 %v207, %v205
    %v210 = vld [vmem:[#allocation7] sm:$0xf]
    %v211 = vld [vmem:[#allocation7 + $0x4] sm:$0xf]
    %v212 = vld [vmem:[#allocation7 + $0x8] sm:$0xf]
    %v213 = vld [vmem:[#allocation7 + $0xc] sm:$0xf]
    %v214 = vld [vmem:[#allocation7 + $0x10] sm:$0xf]
    %v215 = vld [vmem:[#allocation7 + $0x14] sm:$0xf]
    %v216 = vld [vmem:[#allocation7 + $0x18] sm:$0xf]
    %v217 = vld [vmem:[#allocation7 + $0x1c] sm:$0xf]
    %v218 = vld [vmem:[#allocation7 + $0x20] sm:$0xf]
    %v219 = vld [vmem:[#allocation7 + $0x24] sm:$0xf]
    %v220 = vld [vmem:[#allocation7 + $0x28] sm:$0xf]
    %v221 = vld [vmem:[#allocation7 + $0x2c] sm:$0xf]
    %v222 = vld [vmem:[#allocation7 + $0x30] sm:$0xf]
    %v223 = vld [vmem:[#allocation7 + $0x34] sm:$0xf]
    %v224 = vld [vmem:[#allocation7 + $0x38] sm:$0xf]
    %v225 = vld [vmem:[#allocation7 + $0x3c] sm:$0xf]
    %v226 = vld [vmem:[#allocation7 + $0x40] sm:$0xf]
    %v227 = vld [vmem:[#allocation7 + $0x44] sm:$0xf]
    %v228 = vld [vmem:[#allocation7 + $0x48] sm:$0xf]
    %v229 = vld [vmem:[#allocation7 + $0x4c] sm:$0xf]
    %v230 = vld [vmem:[#allocation7 + $0x50] sm:$0xf]
    %v231 = vld [vmem:[#allocation7 + $0x54] sm:$0xf]
    %v232 = vld [vmem:[#allocation7 + $0x58] sm:$0xf]
    %v233 = vld [vmem:[#allocation7 + $0x5c] sm:$0xf]
    %v234 = vld [vmem:[#allocation7 + $0x60] sm:$0xf]
    %v235 = vld [vmem:[#allocation7 + $0x64] sm:$0xf]
    %v236 = vld [vmem:[#allocation7 + $0x68] sm:$0xf]
    %v237 = vld [vmem:[#allocation7 + $0x6c] sm:$0xf]
    %v238 = vld [vmem:[#allocation7 + $0x70] sm:$0xf]
    %v239 = vld [vmem:[#allocation7 + $0x74] sm:$0xf]
    %v240 = vld [vmem:[#allocation7 + $0x78] sm:$0xf]
    %v241 = vld [vmem:[#allocation7 + $0x7c] sm:$0xf]
    %v274 = vunpack.c.l.b16 %v210
    %v275 = vunpack.c.l.b16 %v211
    %v276 = vunpack.c.l.b16 %v212
    %v277 = vunpack.c.l.b16 %v213
    %v278 = vunpack.c.l.b16 %v214
    %v279 = vunpack.c.l.b16 %v215
    %v280 = vunpack.c.l.b16 %v216
    %v281 = vunpack.c.l.b16 %v217
    %v282 = vunpack.c.l.b16 %v218
    %v283 = vunpack.c.l.b16 %v219
    %v284 = vunpack.c.l.b16 %v220
    %v285 = vunpack.c.l.b16 %v221
    %v286 = vunpack.c.l.b16 %v222
    %v287 = vunpack.c.l.b16 %v223
    %v288 = vunpack.c.l.b16 %v224
    %v289 = vunpack.c.l.b16 %v225
    %v290 = vunpack.c.l.b16 %v226
    %v291 = vunpack.c.l.b16 %v227
    %v292 = vunpack.c.l.b16 %v228
    %v293 = vunpack.c.l.b16 %v229
    %v294 = vunpack.c.l.b16 %v230
    %v295 = vunpack.c.l.b16 %v231
    %v296 = vunpack.c.l.b16 %v232
    %v297 = vunpack.c.l.b16 %v233
    %v298 = vunpack.c.l.b16 %v234
    %v299 = vunpack.c.l.b16 %v235
    %v300 = vunpack.c.l.b16 %v236
    %v301 = vunpack.c.l.b16 %v237
    %v302 = vunpack.c.l.b16 %v238
    %v303 = vunpack.c.l.b16 %v239
    %v304 = vunpack.c.l.b16 %v240
    %v305 = vunpack.c.l.b16 %v241
    %v306 = vpack.c.b16 %v275, %v274
    %v307 = vpack.c.b16 %v277, %v276
    %v308 = vpack.c.b16 %v279, %v278
    %v309 = vpack.c.b16 %v281, %v280
    %v310 = vpack.c.b16 %v283, %v282
    %v311 = vpack.c.b16 %v285, %v284
    %v312 = vpack.c.b16 %v287, %v286
    %v313 = vpack.c.b16 %v289, %v288
    %v314 = vpack.c.b16 %v291, %v290
    %v315 = vpack.c.b16 %v293, %v292
    %v316 = vpack.c.b16 %v295, %v294
    %v317 = vpack.c.b16 %v297, %v296
    %v318 = vpack.c.b16 %v299, %v298
    %v319 = vpack.c.b16 %v301, %v300
    %v320 = vpack.c.b16 %v303, %v302
    %v321 = vpack.c.b16 %v305, %v304
    %338 = vmatprep.subr.bf16.mxu0 0
    %339 = vmatpush1.bf16.msra.mxu0 %v306
    %340 = vmatprep.subr.bf16.mxu0 0
    %341 = vmatpush1.bf16.msra.mxu0 %v307
    %342 = vmatprep.subr.bf16.mxu0 0
    %343 = vmatpush1.bf16.msra.mxu0 %v308
    %344 = vmatprep.subr.bf16.mxu0 0
    %345 = vmatpush1.bf16.msra.mxu0 %v309
    %346 = vmatprep.subr.bf16.mxu0 0
    %347 = vmatpush1.bf16.msra.mxu0 %v310
    %348 = vmatprep.subr.bf16.mxu0 0
    %349 = vmatpush1.bf16.msra.mxu0 %v311
    %350 = vmatprep.subr.bf16.mxu0 0
    %351 = vmatpush1.bf16.msra.mxu0 %v312
    %352 = vmatprep.subr.bf16.mxu0 0
    %353 = vmatpush1.bf16.msra.mxu0 %v313
    %354 = vmatprep.subr.bf16.mxu0 0
    %355 = vmatpush1.bf16.msra.mxu0 %v314
    %356 = vmatprep.subr.bf16.mxu0 0
    %357 = vmatpush1.bf16.msra.mxu0 %v315
    %358 = vmatprep.subr.bf16.mxu0 0
    %359 = vmatpush1.bf16.msra.mxu0 %v316
    %360 = vmatprep.subr.bf16.mxu0 0
    %361 = vmatpush1.bf16.msra.mxu0 %v317
    %362 = vmatprep.subr.bf16.mxu0 0
    %363 = vmatpush1.bf16.msra.mxu0 %v318
    %364 = vmatprep.subr.bf16.mxu0 0
    %365 = vmatpush1.bf16.msra.mxu0 %v319
    %366 = vmatprep.subr.bf16.mxu0 0
    %367 = vmatpush1.bf16.msra.mxu0 %v320
    %368 = vmatprep.subr.bf16.mxu0 0
    %369 = vmatpush1.bf16.msra.mxu0 %v321
    %370 = vmatprep.mubr.bf16.mxu0 %v209
    %371 = vmatmul.mubr.bf16.gmra.mrb[0].mxu0 %v208
    %v372 = vpop.f32.mrb[0].mxu0
    %v373 = vadd.f32 0.0, %v372
    %v374 = vpop.f32.mrb[0].mxu0
    %v375 = vpop.f32.mrb[0].mxu0
    %v376 = vadd.f32 0.0, %v375
    %v377 = vpop.f32.mrb[0].mxu0
    %378 = vdwg.mxu0
    %379 = vst [vmem:[#allocation8] sm:$0xff] %v373
    %380 = vst [vmem:[#allocation8 + $0x8] sm:$0xff] %v376
    // Predicated region
    $region26: #{tpu_custom_call.1} parent=1 // pred_check
      _
    $region27: #{tpu_custom_call.1} parent=1 // pred_check_branch
      %382 = sbr.rel (0) target = $region29
    $region28: #{tpu_custom_call.1} parent=1 // pred_region
      %s384 = ssub.s32 256, 256
      %385 = vsyncadd [#allocation4], %s384
      %s386 = sshll.u32 [#allocation8], 4
      %s387 = int_to_ptr.vmem [resolvable:$true] %s386
      %392 = dma.vmem_to_hbm [thread:$0]  %s387, 256, %s3, [#allocation4], 128, 128, 8
    $region29: #{tpu_custom_call.1} parent=1 // pred_fallthru
      _
    // Predicated region
    $region30: #{tpu_custom_call.1} parent=1 // pred_check
      _
    $region31: #{tpu_custom_call.1} parent=1 // pred_check_branch
      %394 = sbr.rel (0) target = $region33
    $region32: #{tpu_custom_call.1} parent=1 // pred_region
      %395 = dma.done [#allocation4], 256
    $region33: #{tpu_custom_call.1} parent=1 // pred_fallthru
      _
    %396 = vsyncpa [#allocation3], 1
    %397 = vsyncpa [#allocation6], 1
    %398 = vsyncpa [#allocation4], 1

</llo_original>
